<compile_context>
chip_gen: v7x
topology: tpu7x:2x2x1
jax: 0.10.0
libtpu: 0.0.40
codegen_flags: <defaults>
</compile_context>

<pallas_src>
import jax
import jax.numpy as jnp
from jax import lax
from jax.experimental import pallas as pl
from jax.experimental.pallas import tpu as pltpu


def domain_matching_kernel(
    # inputs
    fmri_ref,    # [B, tV]   bf16  (K-tiled over V)
    w1t_ref,     # [tV, 2D]  bf16  (K-tiled over V)
    eeg_ref,     # [B, D]    bf16
    w2t_ref,     # [2D, D]   bf16
    wal_ref,     # [4, D, D] bf16  rows: wa1^T, wa2^T, wf1^T, wf2^T
    bias_ref,    # [8, 2D]   f32   rows: b1, b2, gamma, beta, ba1, ba2, bf1, bf2
    temp_ref,    # SMEM (1, 1) f32
    # outputs
    out_ref,     # [3, B, D] f32   rows: fmri_latent, aligned_eeg, aligned_fmri
    loss_ref,    # SMEM (1, 1) f32
    # scratch
    h_acc_ref,   # VMEM [B, 2D] f32 accumulator for the fmri encoder first layer
):
    k = pl.program_id(0)

    @pl.when(k == 0)
    def _():
        h_acc_ref[...] = jnp.zeros_like(h_acc_ref)

    # K-tiled first encoder matmul (bf16 MXU, f32 accumulate).
    h_acc_ref[...] += jnp.dot(fmri_ref[...], w1t_ref[...],
                              preferred_element_type=jnp.float32)

    @pl.when(k == pl.num_programs(0) - 1)
    def _():
        D = eeg_ref.shape[1]

        def mm(x, w):
            return jnp.dot(x.astype(jnp.bfloat16), w,
                           preferred_element_type=jnp.float32)

        # ---- fmri_encoder tail: ReLU -> Dropout(identity) -> Linear -> LayerNorm
        # TODO(synk): Dropout(0.1) is treated as identity (inference/eval mode).
        h = jnp.maximum(h_acc_ref[...] + bias_ref[0:1, :], 0.0)          # [B, 2D]
        f = mm(h, w2t_ref[...]) + bias_ref[1:2, :D]                      # [B, D]
        mean = jnp.mean(f, axis=-1, keepdims=True)
        cent = f - mean
        var = jnp.mean(cent * cent, axis=-1, keepdims=True)
        fmri_latent = (cent * lax.rsqrt(var + 1e-5)
                       * bias_ref[2:3, :D] + bias_ref[3:4, :D])          # [B, D]

        # ---- aligners: Linear -> ReLU -> Linear  (weights read per call)
        aligned_eeg = mm(
            jnp.maximum(mm(eeg_ref[...], wal_ref[0]) + bias_ref[4:5, :D], 0.0),
            wal_ref[1]) + bias_ref[5:6, :D]
        aligned_fmri = mm(
            jnp.maximum(mm(fmri_latent, wal_ref[2]) + bias_ref[6:7, :D], 0.0),
            wal_ref[3]) + bias_ref[7:8, :D]

        out_ref[0] = fmri_latent.astype(out_ref.dtype)
        out_ref[1] = aligned_eeg.astype(out_ref.dtype)
        out_ref[2] = aligned_fmri.astype(out_ref.dtype)

        # ---- symmetric contrastive (InfoNCE) loss (tiny [B,B], f32)
        def l2norm(x):
            ss = jnp.sum(x * x, axis=-1, keepdims=True)
            # x / max(||x||, 1e-12)  ==  x * rsqrt(max(||x||^2, 1e-24))
            return x * lax.rsqrt(jnp.maximum(ss, 1e-24))

        inv_temp = 1.0 / temp_ref[0, 0]                 # exact reciprocal
        eeg_n = l2norm(aligned_eeg) * inv_temp          # fold 1/temp into EEG side
        fmri_n = l2norm(aligned_fmri)

        sim = lax.dot_general(eeg_n, fmri_n, (((1,), (1,)), ((), ())),
                              preferred_element_type=jnp.float32)        # [B, B]
        diag = jnp.sum(eeg_n * fmri_n, axis=-1, keepdims=True)           # [B, 1]

        row_max = jnp.max(sim, axis=1, keepdims=True)
        lse_row = row_max + jnp.log(
            jnp.sum(jnp.exp(sim - row_max), axis=1, keepdims=True))
        col_max = jnp.max(sim, axis=0, keepdims=True)
        lse_col = col_max + jnp.log(
            jnp.sum(jnp.exp(sim - col_max), axis=0, keepdims=True))

        # 0.5*(CE(sim) + CE(sim.T)) = 0.5*(mean(lse_row)+mean(lse_col)) - mean(diag)
        loss = 0.5 * (jnp.mean(lse_row) + jnp.mean(lse_col)) - jnp.mean(diag)
        loss_ref[0, 0] = loss


def _pick_v_tile(V, max_tile):
    """Largest multiple of 128 <= max_tile that divides V (whole V fallback)."""
    if V % 128 != 0:
        return V
    t = max(128, min((max_tile // 128) * 128, V))
    while V % t:
        t -= 128
    return t


def _vmem_budget(B, D, V, tV):
    bf16, f32 = 2, 4
    db = 2 * (B * tV * bf16 + tV * 2 * D * bf16)          # double-buffered streams
    resident = (B * D * bf16 + 2 * D * D * bf16 + 4 * D * D * bf16
                + 8 * 2 * D * f32 + 3 * B * D * f32 + B * 2 * D * f32)
    return int(min(64 * 2**20, max(16 * 2**20, 6 * (db + resident))))


def domain_matching_forward(eeg_latent, target_fmri, params, *, max_tile_v=512):
    # Note: on v7x (64 MiB VMEM) prefer max_tile_v=256.
    B, D = eeg_latent.shape
    V = target_fmri.shape[1]
    two_d = 2 * D

    tV = _pick_v_tile(V, max_tile_v)
    n_k = V // tV

    # Host-side layout / precision plumbing (bf16 MXU operands, pre-transposed).
    eeg_b = eeg_latent.astype(jnp.bfloat16)                      # [B, D]
    fmri_b = target_fmri.astype(jnp.bfloat16)                    # [B, V]
    w1t = params["w1"].T.astype(jnp.bfloat16)                    # [V, 2D]
    w2t = params["w2"].T.astype(jnp.bfloat16)                    # [2D, D]
    wal = jnp.stack([params["wa1"].T, params["wa2"].T,
                     params["wf1"].T, params["wf2"].T],
                    axis=0).astype(jnp.bfloat16)                 # [4, D, D]

    def row(v):
        return jnp.pad(v, ((0, 0), (0, two_d - v.shape[1])))

    biases = jnp.concatenate(
        [row(params["b1"]), row(params["b2"]), row(params["gamma"]),
         row(params["beta"]), row(params["ba1"]), row(params["ba2"]),
         row(params["bf1"]), row(params["bf2"])],
        axis=0).astype(jnp.float32)                              # [8, 2D]

    temp = params["temperature"].reshape(1, 1).astype(jnp.float32)

    smem = pl.BlockSpec(memory_space=pltpu.MemorySpace.SMEM)

    out_shapes = (
        jax.ShapeDtypeStruct((3, B, D), jnp.float32),            # packed activations
        jax.ShapeDtypeStruct((1, 1), jnp.float32),               # alignment_loss
    )

    packed, loss = pl.pallas_call(
        domain_matching_kernel,
        out_shape=out_shapes,
        grid_spec=pltpu.PrefetchScalarGridSpec(
            num_scalar_prefetch=0,
            grid=(n_k,),
            in_specs=[
                pl.BlockSpec((B, tV), lambda k: (0, k)),         # fmri (K-tiled)
                pl.BlockSpec((tV, two_d), lambda k: (k, 0)),     # w1t  (K-tiled)
                pl.BlockSpec((B, D), lambda k: (0, 0)),          # eeg (resident)
                pl.BlockSpec((two_d, D), lambda k: (0, 0)),      # w2t (resident)
                pl.BlockSpec((4, D, D), lambda k: (0, 0, 0)),    # aligner weights
                pl.BlockSpec((8, two_d), lambda k: (0, 0)),      # biases
                smem,                                            # temperature
            ],
            out_specs=(
                pl.BlockSpec((3, B, D), lambda k: (0, 0, 0)),    # packed outputs
                smem,                                            # scalar loss
            ),
            scratch_shapes=[pltpu.VMEM((B, two_d), jnp.float32)],
        ),
        compiler_params=pltpu.CompilerParams(
            dimension_semantics=("arbitrary",),
            vmem_limit_bytes=_vmem_budget(B, D, V, tV),
        ),
    )(fmri_b, w1t, eeg_b, w2t, wal, biases, temp)

    return {
        "fmri_latent": packed[0],
        "aligned_eeg": packed[1],
        "aligned_fmri": packed[2],
        "alignment_loss": loss[0, 0],
    }


def init_params(key, fmri_voxels, embed_dim):
    """Deterministic PyTorch-style (uniform +/- 1/sqrt(fan_in)) init."""
    def linear(key, out_f, in_f):
        k_w, k_b = jax.random.split(key)
        bound = 1.0 / jnp.sqrt(in_f)
        w = jax.random.uniform(k_w, (out_f, in_f), jnp.float32, -bound, bound)
        b = jax.random.uniform(k_b, (1, out_f), jnp.float32, -bound, bound)
        return w, b

    keys = jax.random.split(key, 6)
    w1, b1 = linear(keys[0], embed_dim * 2, fmri_voxels)
    w2, b2 = linear(keys[1], embed_dim, embed_dim * 2)
    wa1, ba1 = linear(keys[2], embed_dim, embed_dim)
    wa2, ba2 = linear(keys[3], embed_dim, embed_dim)
    wf1, bf1 = linear(keys[4], embed_dim, embed_dim)
    wf2, bf2 = linear(keys[5], embed_dim, embed_dim)
    return {
        "w1": w1, "b1": b1, "w2": w2, "b2": b2,
        "gamma": jnp.ones((1, embed_dim), jnp.float32),
        "beta": jnp.zeros((1, embed_dim), jnp.float32),
        "wa1": wa1, "ba1": ba1, "wa2": wa2, "ba2": ba2,
        "wf1": wf1, "bf1": bf1, "wf2": wf2, "bf2": bf2,
        "temperature": jnp.full((1, 1), 0.07, jnp.float32),
    }


def reference_forward(eeg, fmri, p):
    """Pure-JAX reference mirroring the kernel's bf16-input / f32-accumulate matmuls."""
    bf = jnp.bfloat16

    def mm(x, w):
        return jnp.dot(x.astype(bf), w.astype(bf),
                       preferred_element_type=jnp.float32)

    h = jnp.maximum(mm(fmri, p["w1"].T) + p["b1"], 0.0)
    f = mm(h, p["w2"].T) + p["b2"]
    mean = jnp.mean(f, -1, keepdims=True)
    var = jnp.mean((f - mean) ** 2, -1, keepdims=True)
    fmri_latent = (f - mean) / jnp.sqrt(var + 1e-5) * p["gamma"] + p["beta"]
    aligned_eeg = mm(jnp.maximum(mm(eeg, p["wa1"].T) + p["ba1"], 0.0),
                     p["wa2"].T) + p["ba2"]
    aligned_fmri = mm(jnp.maximum(mm(fmri_latent, p["wf1"].T) + p["bf1"], 0.0),
                      p["wf2"].T) + p["bf2"]

    def l2n(x):
        return x / jnp.maximum(jnp.linalg.norm(x, axis=1, keepdims=True), 1e-12)

    sim = jnp.matmul(l2n(aligned_eeg), l2n(aligned_fmri).T,
                     precision=lax.Precision.HIGHEST) / p["temperature"][0, 0]
    lse_r = jax.scipy.special.logsumexp(sim, axis=1)
    lse_c = jax.scipy.special.logsumexp(sim, axis=0)
    diag = jnp.diagonal(sim)
    loss = 0.5 * (jnp.mean(lse_r) + jnp.mean(lse_c)) - jnp.mean(diag)
    return fmri_latent, aligned_eeg, aligned_fmri, loss


if __name__ == "__main__":
    batch = 8
    fmri_voxels = 256     # multiple of 128 -> K-tiled grid of 2 over V
    embed_dim = 32

    key = jax.random.PRNGKey(0)
    k_p, k_eeg, k_fmri = jax.random.split(key, 3)
    params = init_params(k_p, fmri_voxels, embed_dim)
    eeg_latent = jax.random.normal(k_eeg, (batch, embed_dim), jnp.float32)
    target_fmri = jax.random.normal(k_fmri, (batch, fmri_voxels), jnp.float32)

    out = domain_matching_forward(eeg_latent, target_fmri, params)
    jax.block_until_ready(out)

    # sanity check against the pure-JAX reference (same bf16 matmul precision)
    ref_fl, ref_ae, ref_af, ref_loss = reference_forward(eeg_latent, target_fmri, params)
    assert jnp.allclose(out["fmri_latent"], ref_fl, rtol=1e-2, atol=1e-2)
    assert jnp.allclose(out["aligned_eeg"], ref_ae, rtol=1e-2, atol=1e-2)
    assert jnp.allclose(out["aligned_fmri"], ref_af, rtol=1e-2, atol=1e-2)
    assert jnp.allclose(out["alignment_loss"], ref_loss, rtol=1e-2, atol=1e-2)

    print("KERNEL_OK")
</pallas_src>

<mosaic_0001>
module attributes {stable_mosaic.version = 11 : i64} {
  func.func @domain_matching_kernel(%arg0: i32, %arg1: memref<8x256xbf16, #tpu.memory_space<vmem>>, %arg2: memref<256x64xbf16, #tpu.memory_space<vmem>>, %arg3: memref<8x32xbf16, #tpu.memory_space<vmem>>, %arg4: memref<64x32xbf16, #tpu.memory_space<vmem>>, %arg5: memref<4x32x32xbf16, #tpu.memory_space<vmem>>, %arg6: memref<8x64xf32, #tpu.memory_space<vmem>>, %arg7: memref<1x1xf32, #tpu.memory_space<smem>>, %arg8: memref<3x8x32xf32, #tpu.memory_space<vmem>>, %arg9: memref<1x1xf32, #tpu.memory_space<smem>>, %arg10: memref<8x64xf32, #tpu.memory_space<vmem>>) attributes {dimension_semantics = [#tpu.dimension_semantics<arbitrary>], iteration_bounds = array<i64: 1>, scalar_prefetch = 0 : i64, scratch_operands = 1 : i64, tpu.core_type = #tpu.core_type<tc>, window_params = [{transform_indices = @transform_0, window_bounds = array<i64: 8, 256>}, {transform_indices = @transform_1, window_bounds = array<i64: 256, 64>}, {pipeline_mode = #tpu.pipeline_mode<synchronous>, transform_indices = @transform_2, window_bounds = array<i64: 8, 32>}, {pipeline_mode = #tpu.pipeline_mode<synchronous>, transform_indices = @transform_3, window_bounds = array<i64: 64, 32>}, {pipeline_mode = #tpu.pipeline_mode<synchronous>, transform_indices = @transform_4, window_bounds = array<i64: 4, 32, 32>}, {pipeline_mode = #tpu.pipeline_mode<synchronous>, transform_indices = @transform_5, window_bounds = array<i64: 8, 64>}, {transform_indices = @transform_6, window_bounds = array<i64: 1, 1>}, {pipeline_mode = #tpu.pipeline_mode<synchronous>, transform_indices = @transform_7, window_bounds = array<i64: 3, 8, 32>}, {transform_indices = @transform_8, window_bounds = array<i64: 1, 1>}]} {
    %c0_i32 = arith.constant 0 : i32
    %0 = arith.cmpi eq, %arg0, %c0_i32 : i32
    %1 = arith.extui %0 : i1 to i32
    %c0_i32_0 = arith.constant 0 : i32
    %2 = arith.cmpi ne, %1, %c0_i32_0 : i32
    scf.if %2 {
      %cst_10 = arith.constant 0.000000e+00 : f32
      %12 = vector.broadcast %cst_10 : f32 to vector<8x64xf32>
      %c0_11 = arith.constant 0 : index
      %c0_12 = arith.constant 0 : index
      %13 = vector.load %arg10[%c0_11, %c0_12] : memref<8x64xf32, #tpu.memory_space<vmem>>, vector<8x64xf32>
      tpu.vector_store %arg10[%c0_11, %c0_12], %12 {strides = array<i32>} : memref<8x64xf32, #tpu.memory_space<vmem>>, vector<8x64xf32>,
    } else {
    }
    %c0 = arith.constant 0 : index
    %c0_1 = arith.constant 0 : index
    %3 = vector.load %arg10[%c0, %c0_1] : memref<8x64xf32, #tpu.memory_space<vmem>>, vector<8x64xf32>
    %c0_2 = arith.constant 0 : index
    %c0_3 = arith.constant 0 : index
    %4 = vector.load %arg1[%c0_2, %c0_3] : memref<8x256xbf16, #tpu.memory_space<vmem>>, vector<8x256xbf16>
    %c0_4 = arith.constant 0 : index
    %c0_5 = arith.constant 0 : index
    %5 = vector.load %arg2[%c0_4, %c0_5] : memref<256x64xbf16, #tpu.memory_space<vmem>>, vector<256x64xbf16>
    %cst = arith.constant dense<0.000000e+00> : vector<8x64xf32>
    %6 = tpu.matmul %4, %5, %cst {dimension_numbers = #tpu.dot_dimension_numbers<[1], [0], [0], [1], [0, 0, 1, 1], [], []>} : vector<8x256xbf16>, vector<256x64xbf16>, vector<8x64xf32> -> vector<8x64xf32>
    %7 = arith.addf %3, %6 : vector<8x64xf32>
    %c0_6 = arith.constant 0 : index
    %c0_7 = arith.constant 0 : index
    %8 = vector.load %arg10[%c0_6, %c0_7] : memref<8x64xf32, #tpu.memory_space<vmem>>, vector<8x64xf32>
    tpu.vector_store %arg10[%c0_6, %c0_7], %7 {strides = array<i32>} : memref<8x64xf32, #tpu.memory_space<vmem>>, vector<8x64xf32>,
    %c0_i32_8 = arith.constant 0 : i32
    %9 = arith.cmpi eq, %arg0, %c0_i32_8 : i32
    %10 = arith.extui %9 : i1 to i32
    %c0_i32_9 = arith.constant 0 : i32
    %11 = arith.cmpi ne, %10, %c0_i32_9 : i32
    scf.if %11 {
      %c0_10 = arith.constant 0 : index
      %c0_11 = arith.constant 0 : index
      %12 = vector.load %arg10[%c0_10, %c0_11] : memref<8x64xf32, #tpu.memory_space<vmem>>, vector<8x64xf32>
      %c0_12 = arith.constant 0 : index
      %c0_13 = arith.constant 0 : index
      %13 = vector.load %arg6[%c0_12, %c0_13] : memref<8x64xf32, #tpu.memory_space<vmem>>, vector<1x64xf32>
      %14 = vector.broadcast %13 : vector<1x64xf32> to vector<8x64xf32>
      %15 = arith.addf %12, %14 : vector<8x64xf32>
      %cst_14 = arith.constant 0.000000e+00 : f32
      %16 = vector.broadcast %cst_14 : f32 to vector<8x64xf32>
      %17 = arith.maximumf %15, %16 : vector<8x64xf32>
      %c0_15 = arith.constant 0 : index
      %c0_16 = arith.constant 0 : index
      %18 = vector.load %arg4[%c0_15, %c0_16] : memref<64x32xbf16, #tpu.memory_space<vmem>>, vector<64x32xbf16>
      %19 = arith.truncf %17 : vector<8x64xf32> to vector<8x64xbf16>
      %cst_17 = arith.constant dense<0.000000e+00> : vector<8x32xf32>
      %20 = tpu.matmul %19, %18, %cst_17 {dimension_numbers = #tpu.dot_dimension_numbers<[1], [0], [0], [1], [0, 0, 1, 1], [], []>} : vector<8x64xbf16>, vector<64x32xbf16>, vector<8x32xf32> -> vector<8x32xf32>
      %c1 = arith.constant 1 : index
      %c0_18 = arith.constant 0 : index
      %21 = vector.load %arg6[%c1, %c0_18] : memref<8x64xf32, #tpu.memory_space<vmem>>, vector<1x32xf32>
      %22 = vector.broadcast %21 : vector<1x32xf32> to vector<8x32xf32>
      %23 = arith.addf %20, %22 : vector<8x32xf32>
      %cst_19 = arith.constant dense<0.000000e+00> : vector<8xf32>
      %24 = vector.multi_reduction <add>, %23, %cst_19 [1] : vector<8x32xf32> to vector<8xf32>
      %25 = vector.shape_cast %24 : vector<8xf32> to vector<8x1xf32>
      %cst_20 = arith.constant 3.200000e+01 : f32
      %26 = vector.broadcast %cst_20 : f32 to vector<8x1xf32>
      %27 = arith.divf %25, %26 : vector<8x1xf32>
      %28 = vector.broadcast %27 : vector<8x1xf32> to vector<8x32xf32>
      %29 = arith.subf %23, %28 : vector<8x32xf32>
      %30 = arith.mulf %29, %29 : vector<8x32xf32>
      %cst_21 = arith.constant dense<0.000000e+00> : vector<8xf32>
      %31 = vector.multi_reduction <add>, %30, %cst_21 [1] : vector<8x32xf32> to vector<8xf32>
      %32 = vector.shape_cast %31 : vector<8xf32> to vector<8x1xf32>
      %cst_22 = arith.constant 3.200000e+01 : f32
      %33 = vector.broadcast %cst_22 : f32 to vector<8x1xf32>
      %34 = arith.divf %32, %33 : vector<8x1xf32>
      %cst_23 = arith.constant 9.99999974E-6 : f32
      %35 = vector.broadcast %cst_23 : f32 to vector<8x1xf32>
      %36 = arith.addf %34, %35 : vector<8x1xf32>
      %37 = math.rsqrt %36 : vector<8x1xf32>
      %38 = vector.broadcast %37 : vector<8x1xf32> to vector<8x32xf32>
      %39 = arith.mulf %29, %38 : vector<8x32xf32>
      %c2 = arith.constant 2 : index
      %c0_24 = arith.constant 0 : index
      %40 = vector.load %arg6[%c2, %c0_24] : memref<8x64xf32, #tpu.memory_space<vmem>>, vector<1x32xf32>
      %41 = vector.broadcast %40 : vector<1x32xf32> to vector<8x32xf32>
      %42 = arith.mulf %39, %41 : vector<8x32xf32>
      %c3 = arith.constant 3 : index
      %c0_25 = arith.constant 0 : index
      %43 = vector.load %arg6[%c3, %c0_25] : memref<8x64xf32, #tpu.memory_space<vmem>>, vector<1x32xf32>
      %44 = vector.broadcast %43 : vector<1x32xf32> to vector<8x32xf32>
      %45 = arith.addf %42, %44 : vector<8x32xf32>
      %c0_26 = arith.constant 0 : index
      %c0_27 = arith.constant 0 : index
      %46 = vector.load %arg3[%c0_26, %c0_27] : memref<8x32xbf16, #tpu.memory_space<vmem>>, vector<8x32xbf16>
      %c0_28 = arith.constant 0 : index
      %c0_29 = arith.constant 0 : index
      %c0_30 = arith.constant 0 : index
      %47 = vector.load %arg5[%c0_28, %c0_29, %c0_30] : memref<4x32x32xbf16, #tpu.memory_space<vmem>>, vector<1x32x32xbf16>
      %48 = vector.shape_cast %47 : vector<1x32x32xbf16> to vector<32x32xbf16>
      %cst_31 = arith.constant dense<0.000000e+00> : vector<8x32xf32>
      %49 = tpu.matmul %46, %48, %cst_31 {dimension_numbers = #tpu.dot_dimension_numbers<[1], [0], [0], [1], [0, 0, 1, 1], [], []>} : vector<8x32xbf16>, vector<32x32xbf16>, vector<8x32xf32> -> vector<8x32xf32>
      %c4 = arith.constant 4 : index
      %c0_32 = arith.constant 0 : index
      %50 = vector.load %arg6[%c4, %c0_32] : memref<8x64xf32, #tpu.memory_space<vmem>>, vector<1x32xf32>
      %51 = vector.broadcast %50 : vector<1x32xf32> to vector<8x32xf32>
      %52 = arith.addf %49, %51 : vector<8x32xf32>
      %cst_33 = arith.constant 0.000000e+00 : f32
      %53 = vector.broadcast %cst_33 : f32 to vector<8x32xf32>
      %54 = arith.maximumf %52, %53 : vector<8x32xf32>
      %c1_34 = arith.constant 1 : index
      %c0_35 = arith.constant 0 : index
      %c0_36 = arith.constant 0 : index
      %55 = vector.load %arg5[%c1_34, %c0_35, %c0_36] : memref<4x32x32xbf16, #tpu.memory_space<vmem>>, vector<1x32x32xbf16>
      %56 = vector.shape_cast %55 : vector<1x32x32xbf16> to vector<32x32xbf16>
      %57 = arith.truncf %54 : vector<8x32xf32> to vector<8x32xbf16>
      %cst_37 = arith.constant dense<0.000000e+00> : vector<8x32xf32>
      %58 = tpu.matmul %57, %56, %cst_37 {dimension_numbers = #tpu.dot_dimension_numbers<[1], [0], [0], [1], [0, 0, 1, 1], [], []>} : vector<8x32xbf16>, vector<32x32xbf16>, vector<8x32xf32> -> vector<8x32xf32>
      %c5 = arith.constant 5 : index
      %c0_38 = arith.constant 0 : index
      %59 = vector.load %arg6[%c5, %c0_38] : memref<8x64xf32, #tpu.memory_space<vmem>>, vector<1x32xf32>
      %60 = vector.broadcast %59 : vector<1x32xf32> to vector<8x32xf32>
      %61 = arith.addf %58, %60 : vector<8x32xf32>
      %c2_39 = arith.constant 2 : index
      %c0_40 = arith.constant 0 : index
      %c0_41 = arith.constant 0 : index
      %62 = vector.load %arg5[%c2_39, %c0_40, %c0_41] : memref<4x32x32xbf16, #tpu.memory_space<vmem>>, vector<1x32x32xbf16>
      %63 = vector.shape_cast %62 : vector<1x32x32xbf16> to vector<32x32xbf16>
      %64 = arith.truncf %45 : vector<8x32xf32> to vector<8x32xbf16>
      %cst_42 = arith.constant dense<0.000000e+00> : vector<8x32xf32>
      %65 = tpu.matmul %64, %63, %cst_42 {dimension_numbers = #tpu.dot_dimension_numbers<[1], [0], [0], [1], [0, 0, 1, 1], [], []>} : vector<8x32xbf16>, vector<32x32xbf16>, vector<8x32xf32> -> vector<8x32xf32>
      %c6 = arith.constant 6 : index
      %c0_43 = arith.constant 0 : index
      %66 = vector.load %arg6[%c6, %c0_43] : memref<8x64xf32, #tpu.memory_space<vmem>>, vector<1x32xf32>
      %67 = vector.broadcast %66 : vector<1x32xf32> to vector<8x32xf32>
      %68 = arith.addf %65, %67 : vector<8x32xf32>
      %cst_44 = arith.constant 0.000000e+00 : f32
      %69 = vector.broadcast %cst_44 : f32 to vector<8x32xf32>
      %70 = arith.maximumf %68, %69 : vector<8x32xf32>
      %c3_45 = arith.constant 3 : index
      %c0_46 = arith.constant 0 : index
      %c0_47 = arith.constant 0 : index
      %71 = vector.load %arg5[%c3_45, %c0_46, %c0_47] : memref<4x32x32xbf16, #tpu.memory_space<vmem>>, vector<1x32x32xbf16>
      %72 = vector.shape_cast %71 : vector<1x32x32xbf16> to vector<32x32xbf16>
      %73 = arith.truncf %70 : vector<8x32xf32> to vector<8x32xbf16>
      %cst_48 = arith.constant dense<0.000000e+00> : vector<8x32xf32>
      %74 = tpu.matmul %73, %72, %cst_48 {dimension_numbers = #tpu.dot_dimension_numbers<[1], [0], [0], [1], [0, 0, 1, 1], [], []>} : vector<8x32xbf16>, vector<32x32xbf16>, vector<8x32xf32> -> vector<8x32xf32>
      %c7 = arith.constant 7 : index
      %c0_49 = arith.constant 0 : index
      %75 = vector.load %arg6[%c7, %c0_49] : memref<8x64xf32, #tpu.memory_space<vmem>>, vector<1x32xf32>
      %76 = vector.broadcast %75 : vector<1x32xf32> to vector<8x32xf32>
      %77 = arith.addf %74, %76 : vector<8x32xf32>
      %c0_50 = arith.constant 0 : index
      %c0_51 = arith.constant 0 : index
      %c0_52 = arith.constant 0 : index
      %78 = vector.load %arg8[%c0_50, %c0_51, %c0_52] : memref<3x8x32xf32, #tpu.memory_space<vmem>>, vector<1x8x32xf32>
      %79 = vector.shape_cast %78 : vector<1x8x32xf32> to vector<8x32xf32>
      %80 = vector.shape_cast %45 : vector<8x32xf32> to vector<1x8x32xf32>
      tpu.vector_store %arg8[%c0_50, %c0_51, %c0_52], %80 {strides = array<i32>} : memref<3x8x32xf32, #tpu.memory_space<vmem>>, vector<1x8x32xf32>,
      %c1_53 = arith.constant 1 : index
      %c0_54 = arith.constant 0 : index
      %c0_55 = arith.constant 0 : index
      %81 = vector.load %arg8[%c1_53, %c0_54, %c0_55] : memref<3x8x32xf32, #tpu.memory_space<vmem>>, vector<1x8x32xf32>
      %82 = vector.shape_cast %81 : vector<1x8x32xf32> to vector<8x32xf32>
      %83 = vector.shape_cast %61 : vector<8x32xf32> to vector<1x8x32xf32>
      tpu.vector_store %arg8[%c1_53, %c0_54, %c0_55], %83 {strides = array<i32>} : memref<3x8x32xf32, #tpu.memory_space<vmem>>, vector<1x8x32xf32>,
      %c2_56 = arith.constant 2 : index
      %c0_57 = arith.constant 0 : index
      %c0_58 = arith.constant 0 : index
      %84 = vector.load %arg8[%c2_56, %c0_57, %c0_58] : memref<3x8x32xf32, #tpu.memory_space<vmem>>, vector<1x8x32xf32>
      %85 = vector.shape_cast %84 : vector<1x8x32xf32> to vector<8x32xf32>
      %86 = vector.shape_cast %77 : vector<8x32xf32> to vector<1x8x32xf32>
      tpu.vector_store %arg8[%c2_56, %c0_57, %c0_58], %86 {strides = array<i32>} : memref<3x8x32xf32, #tpu.memory_space<vmem>>, vector<1x8x32xf32>,
      %c0_59 = arith.constant 0 : index
      %c0_60 = arith.constant 0 : index
      %87 = memref.load %arg7[%c0_59, %c0_60] : memref<1x1xf32, #tpu.memory_space<smem>>
      %cst_61 = arith.constant 1.000000e+00 : f32
      %88 = arith.divf %cst_61, %87 : f32
      %89 = arith.mulf %61, %61 : vector<8x32xf32>
      %cst_62 = arith.constant dense<0.000000e+00> : vector<8xf32>
      %90 = vector.multi_reduction <add>, %89, %cst_62 [1] : vector<8x32xf32> to vector<8xf32>
      %91 = vector.shape_cast %90 : vector<8xf32> to vector<8x1xf32>
      %cst_63 = arith.constant 1.000000e-24 : f32
      %92 = vector.broadcast %cst_63 : f32 to vector<8x1xf32>
      %93 = arith.maximumf %91, %92 : vector<8x1xf32>
      %94 = math.rsqrt %93 : vector<8x1xf32>
      %95 = vector.broadcast %94 : vector<8x1xf32> to vector<8x32xf32>
      %96 = arith.mulf %61, %95 : vector<8x32xf32>
      %97 = vector.broadcast %88 : f32 to vector<8x32xf32>
      %98 = arith.mulf %96, %97 : vector<8x32xf32>
      %99 = arith.mulf %77, %77 : vector<8x32xf32>
      %cst_64 = arith.constant dense<0.000000e+00> : vector<8xf32>
      %100 = vector.multi_reduction <add>, %99, %cst_64 [1] : vector<8x32xf32> to vector<8xf32>
      %101 = vector.shape_cast %100 : vector<8xf32> to vector<8x1xf32>
      %cst_65 = arith.constant 1.000000e-24 : f32
      %102 = vector.broadcast %cst_65 : f32 to vector<8x1xf32>
      %103 = arith.maximumf %101, %102 : vector<8x1xf32>
      %104 = math.rsqrt %103 : vector<8x1xf32>
      %105 = vector.broadcast %104 : vector<8x1xf32> to vector<8x32xf32>
      %106 = arith.mulf %77, %105 : vector<8x32xf32>
      %cst_66 = arith.constant dense<0.000000e+00> : vector<8x8xf32>
      %107 = tpu.matmul %98, %106, %cst_66 {dimension_numbers = #tpu.dot_dimension_numbers<[1], [1], [0], [0], [0, 0, 1, 0], [], []>} : vector<8x32xf32>, vector<8x32xf32>, vector<8x8xf32> -> vector<8x8xf32>
      %108 = arith.mulf %98, %106 : vector<8x32xf32>
      %cst_67 = arith.constant dense<0.000000e+00> : vector<8xf32>
      %109 = vector.multi_reduction <add>, %108, %cst_67 [1] : vector<8x32xf32> to vector<8xf32>
      %110 = vector.shape_cast %109 : vector<8xf32> to vector<8x1xf32>
      %cst_68 = arith.constant dense<0xFF800000> : vector<8xf32>
      %111 = vector.multi_reduction <maximumf>, %107, %cst_68 [1] : vector<8x8xf32> to vector<8xf32>
      %112 = vector.shape_cast %111 : vector<8xf32> to vector<8x1xf32>
      %113 = vector.broadcast %112 : vector<8x1xf32> to vector<8x8xf32>
      %114 = arith.subf %107, %113 : vector<8x8xf32>
      %115 = math.exp %114 : vector<8x8xf32>
      %cst_69 = arith.constant dense<0.000000e+00> : vector<8xf32>
      %116 = vector.multi_reduction <add>, %115, %cst_69 [1] : vector<8x8xf32> to vector<8xf32>
      %117 = vector.shape_cast %116 : vector<8xf32> to vector<8x1xf32>
      %118 = math.log %117 : vector<8x1xf32>
      %119 = arith.addf %112, %118 : vector<8x1xf32>
      %cst_70 = arith.constant dense<0xFF800000> : vector<8xf32>
      %120 = vector.multi_reduction <maximumf>, %107, %cst_70 [0] : vector<8x8xf32> to vector<8xf32>
      %121 = vector.shape_cast %120 : vector<8xf32> to vector<1x8xf32>
      %122 = vector.broadcast %121 : vector<1x8xf32> to vector<8x8xf32>
      %123 = arith.subf %107, %122 : vector<8x8xf32>
      %124 = math.exp %123 : vector<8x8xf32>
      %cst_71 = arith.constant dense<0.000000e+00> : vector<8xf32>
      %125 = vector.multi_reduction <add>, %124, %cst_71 [0] : vector<8x8xf32> to vector<8xf32>
      %126 = vector.shape_cast %125 : vector<8xf32> to vector<1x8xf32>
      %127 = math.log %126 : vector<1x8xf32>
      %128 = arith.addf %121, %127 : vector<1x8xf32>
      %129 = vector.shape_cast %119 : vector<8x1xf32> to vector<1x8x1xf32>
      %cst_72 = arith.constant dense<0.000000e+00> : vector<1xf32>
      %130 = vector.multi_reduction <add>, %129, %cst_72 [1, 2] : vector<1x8x1xf32> to vector<1xf32>
      %131 = vector.shape_cast %130 : vector<1xf32> to vector<1x1x1xf32>
      %132 = vector.extract %131[0, 0, 0] : f32 from vector<1x1x1xf32>
      %cst_73 = arith.constant 8.000000e+00 : f32
      %133 = arith.divf %132, %cst_73 : f32
      %134 = vector.shape_cast %128 : vector<1x8xf32> to vector<1x1x8xf32>
      %cst_74 = arith.constant dense<0.000000e+00> : vector<1xf32>
      %135 = vector.multi_reduction <add>, %134, %cst_74 [1, 2] : vector<1x1x8xf32> to vector<1xf32>
      %136 = vector.shape_cast %135 : vector<1xf32> to vector<1x1x1xf32>
      %137 = vector.extract %136[0, 0, 0] : f32 from vector<1x1x1xf32>
      %cst_75 = arith.constant 8.000000e+00 : f32
      %138 = arith.divf %137, %cst_75 : f32
      %139 = arith.addf %133, %138 : f32
      %cst_76 = arith.constant 5.000000e-01 : f32
      %140 = arith.mulf %cst_76, %139 : f32
      %141 = vector.shape_cast %110 : vector<8x1xf32> to vector<1x8x1xf32>
      %cst_77 = arith.constant dense<0.000000e+00> : vector<1xf32>
      %142 = vector.multi_reduction <add>, %141, %cst_77 [1, 2] : vector<1x8x1xf32> to vector<1xf32>
      %143 = vector.shape_cast %142 : vector<1xf32> to vector<1x1x1xf32>
      %144 = vector.extract %143[0, 0, 0] : f32 from vector<1x1x1xf32>
      %cst_78 = arith.constant 8.000000e+00 : f32
      %145 = arith.divf %144, %cst_78 : f32
      %146 = arith.subf %140, %145 : f32
      %c0_79 = arith.constant 0 : index
      %c0_80 = arith.constant 0 : index
      %147 = memref.load %arg9[%c0_79, %c0_80] : memref<1x1xf32, #tpu.memory_space<smem>>
      memref.store %146, %arg9[%c0_79, %c0_80] : memref<1x1xf32, #tpu.memory_space<smem>>
    } else {
    }
    return
  }
  func.func @transform_0(%arg0: i32) -> (i32, i32) {
    %c0_i32 = arith.constant 0 : i32
    %c0_i32_0 = arith.constant 0 : i32
    return %c0_i32, %arg0 : i32, i32
  }
  func.func @transform_1(%arg0: i32) -> (i32, i32) {
    %c0_i32 = arith.constant 0 : i32
    %c0_i32_0 = arith.constant 0 : i32
    return %arg0, %c0_i32 : i32, i32
  }
  func.func @transform_2(%arg0: i32) -> (i32, i32) {
    %c0_i32 = arith.constant 0 : i32
    %c0_i32_0 = arith.constant 0 : i32
    %c0_i32_1 = arith.constant 0 : i32
    return %c0_i32, %c0_i32_0 : i32, i32
  }
  func.func @transform_3(%arg0: i32) -> (i32, i32) {
    %c0_i32 = arith.constant 0 : i32
    %c0_i32_0 = arith.constant 0 : i32
    %c0_i32_1 = arith.constant 0 : i32
    return %c0_i32, %c0_i32_0 : i32, i32
  }
  func.func @transform_4(%arg0: i32) -> (i32, i32, i32) {
    %c0_i32 = arith.constant 0 : i32
    %c0_i32_0 = arith.constant 0 : i32
    %c0_i32_1 = arith.constant 0 : i32
    %c0_i32_2 = arith.constant 0 : i32
    return %c0_i32, %c0_i32_0, %c0_i32_1 : i32, i32, i32
  }
  func.func @transform_5(%arg0: i32) -> (i32, i32) {
    %c0_i32 = arith.constant 0 : i32
    %c0_i32_0 = arith.constant 0 : i32
    %c0_i32_1 = arith.constant 0 : i32
    return %c0_i32, %c0_i32_0 : i32, i32
  }
  func.func @transform_6(%arg0: i32) -> (i32, i32) {
    %c0_i32 = arith.constant 0 : i32
    %c0_i32_0 = arith.constant 0 : i32
    %c0_i32_1 = arith.constant 0 : i32
    return %c0_i32, %c0_i32_0 : i32, i32
  }
  func.func @transform_7(%arg0: i32) -> (i32, i32, i32) {
    %c0_i32 = arith.constant 0 : i32
    %c0_i32_0 = arith.constant 0 : i32
    %c0_i32_1 = arith.constant 0 : i32
    %c0_i32_2 = arith.constant 0 : i32
    return %c0_i32, %c0_i32_0, %c0_i32_1 : i32, i32, i32
  }
  func.func @transform_8(%arg0: i32) -> (i32, i32) {
    %c0_i32 = arith.constant 0 : i32
    %c0_i32_0 = arith.constant 0 : i32
    %c0_i32_1 = arith.constant 0 : i32
    return %c0_i32, %c0_i32_0 : i32, i32
  }
}

</mosaic_0001>

<llo_original>
// kernel: tpu_custom_call.1
$region0: #{tpu_custom_call.1}
  #allocation0 [shape = 'u32[]', space=smem, size = 0x4, offset = 0x4, fixed_abs, tag = 'smem constant byte address 0x4 - core index']
  #allocation1 [shape = 'u32[144,128]{1,0:T(1,128)}', space=vmem, size = 0x12000, scoped, tag = 'internal scratch']
  #allocation2 [shape = 'f32[8,64]{1,0:T(8,128)}', space=vmem, size = 0x1000, scoped, tag = 'scratch operand']
  #allocation3 [shape = 'f32[1,1]{1,0:T(1,128)S(6)}', space=smem, size = 0x200, scoped, tag = 'scoped memory for tpu_custom_call.1']
  %s0 = inlined_call_operand.vmem [shape: bf16[8,256], index: 0, kind: input, shape index: {}]
  %s1 = inlined_call_operand.vmem [shape: bf16[256,64], index: 1, kind: input, shape index: {}]
  %s2 = inlined_call_operand.vmem [shape: bf16[8,32], index: 2, kind: input, shape index: {}]
  %s3 = inlined_call_operand.vmem [shape: bf16[64,32], index: 3, kind: input, shape index: {}]
  %s4 = inlined_call_operand.vmem [shape: bf16[4,32,32], index: 4, kind: input, shape index: {}]
  %s5 = inlined_call_operand.vmem [shape: f32[8,64], index: 5, kind: input, shape index: {}]
  %s6 = inlined_call_operand.<no memory space> [shape: f32[1,1], index: 6, kind: input, shape index: {}]
  %s7 = inlined_call_operand.hbm [shape: f32[3,8,32], index: 7, kind: output, shape index: {0}]
  %s8 = inlined_call_operand.hbm [shape: f32[1,1], index: 8, kind: output, shape index: {1}]
  %9 = xla_tuple %s7, %s8
  %s10 = sld [smem:[#allocation0]]
  $region54: #{tpu_custom_call.1} parent=0
    _
  %s12 = ssub.s32 1, %s10
  %s13 = scalar_select 0, %s12, %s10
  %14 = sst [smem:[#allocation3]] %s6
  $region1: #{tpu_custom_call.1} parent=0
    #allocation4 [shape = 'u8[12288]{0}', space=vmem, size = 0x3000, scoped, tag = 'output window, operand 0, single buffered']
    #allocation5 [shape = 's32[1]{0}', space=sflag, size = 0x4, scoped, tag = 'scoped memory for tpu_custom_call.1']
    #allocation6 [shape = 's32[1]{0}', space=sflag, size = 0x4, scoped, tag = 'scoped memory for tpu_custom_call.1']
    #allocation7 [shape = 'u8[512]{0}', space=smem, size = 0x200, scoped, tag = 'output window, operand 1, single buffered']
    %15 = vsyncpa [#allocation5], 0
    %16 = vsyncpa [#allocation6], 0
    // Predicated region
    $region2: #{tpu_custom_call.1} parent=1 // pred_check
      _
    $region3: #{tpu_custom_call.1} parent=1 // pred_check_branch
      %18 = sbr.rel (0) target = $region5
    $region4: #{tpu_custom_call.1} parent=1 // pred_region
      _
    $region5: #{tpu_custom_call.1} parent=1 // pred_fallthru
      _
    // Predicated region
    $region6: #{tpu_custom_call.1} parent=1 // pred_check
      _
    $region7: #{tpu_custom_call.1} parent=1 // pred_check_branch
      %20 = sbr.rel (0) target = $region9
    $region8: #{tpu_custom_call.1} parent=1 // pred_region
      _
    $region9: #{tpu_custom_call.1} parent=1 // pred_fallthru
      _
    // Predicated region
    $region10: #{tpu_custom_call.1} parent=1 // pred_check
      _
    $region11: #{tpu_custom_call.1} parent=1 // pred_check_branch
      %22 = sbr.rel (0) target = $region13
    $region12: #{tpu_custom_call.1} parent=1 // pred_region
      _
    $region13: #{tpu_custom_call.1} parent=1 // pred_fallthru
      _
    // Predicated region
    $region14: #{tpu_custom_call.1} parent=1 // pred_check
      _
    $region15: #{tpu_custom_call.1} parent=1 // pred_check_branch
      %24 = sbr.rel (0) target = $region17
    $region16: #{tpu_custom_call.1} parent=1 // pred_region
      _
    $region17: #{tpu_custom_call.1} parent=1 // pred_fallthru
      _
    // Predicated region
    $region18: #{tpu_custom_call.1} parent=1 // pred_check
      _
    $region19: #{tpu_custom_call.1} parent=1 // pred_check_branch
      %26 = sbr.rel (0) target = $region21
    $region20: #{tpu_custom_call.1} parent=1 // pred_region
      _
    $region21: #{tpu_custom_call.1} parent=1 // pred_fallthru
      _
    // Predicated region
    $region22: #{tpu_custom_call.1} parent=1 // pred_check
      _
    $region23: #{tpu_custom_call.1} parent=1 // pred_check_branch
      %28 = sbr.rel (0) target = $region25
    $region24: #{tpu_custom_call.1} parent=1 // pred_region
      _
    $region25: #{tpu_custom_call.1} parent=1 // pred_fallthru
      _
    // Predicated region
    $region26: #{tpu_custom_call.1} parent=1 // pred_check
      _
    $region27: #{tpu_custom_call.1} parent=1 // pred_check_branch
      %30 = sbr.rel (0) target = $region29
    $region28: #{tpu_custom_call.1} parent=1 // pred_region
      _
    $region29: #{tpu_custom_call.1} parent=1 // pred_fallthru
      _
    %p32 = scmp.eq.s32.totalorder 0, 0
    // Predicated region
    $region30: #{tpu_custom_call.1} parent=1 // pred_check
      %p33 = pneg %p32
    $region31: #{tpu_custom_call.1} parent=1 // pred_check_branch
      %35 = sbr.rel (%p33) target = $region33
    $region32: #{tpu_custom_call.1} parent=1 // pred_region
      %vm36 = vcmask 523264
      %37 = vst.msk [vmem:[#allocation2] sm:$0xff] %vm36, 0.0
    $region33: #{tpu_custom_call.1} parent=1 // pred_fallthru
      _
    %v38 = vld [vmem:[#allocation2] sm:$0xff]
    %v39 = vld [vmem:[%s0] sm:$0xff]
    %v40 = vld [vmem:[%s1] sm:$0xf]
    %v41 = vld [vmem:[%s1 + $0x4] sm:$0xf]
    %v42 = vld [vmem:[%s1 + $0x8] sm:$0xf]
    %v43 = vld [vmem:[%s1 + $0xc] sm:$0xf]
    %v44 = vld [vmem:[%s1 + $0x10] sm:$0xf]
    %v45 = vld [vmem:[%s1 + $0x14] sm:$0xf]
    %v46 = vld [vmem:[%s1 + $0x18] sm:$0xf]
    %v47 = vld [vmem:[%s1 + $0x1c] sm:$0xf]
    %v48 = vld [vmem:[%s1 + $0x20] sm:$0xf]
    %v49 = vld [vmem:[%s1 + $0x24] sm:$0xf]
    %v50 = vld [vmem:[%s1 + $0x28] sm:$0xf]
    %v51 = vld [vmem:[%s1 + $0x2c] sm:$0xf]
    %v52 = vld [vmem:[%s1 + $0x30] sm:$0xf]
    %v53 = vld [vmem:[%s1 + $0x34] sm:$0xf]
    %v54 = vld [vmem:[%s1 + $0x38] sm:$0xf]
    %v55 = vld [vmem:[%s1 + $0x3c] sm:$0xf]
    %v56 = vld [vmem:[%s1 + $0x40] sm:$0xf]
    %v57 = vld [vmem:[%s1 + $0x44] sm:$0xf]
    %v58 = vld [vmem:[%s1 + $0x48] sm:$0xf]
    %v59 = vld [vmem:[%s1 + $0x4c] sm:$0xf]
    %v60 = vld [vmem:[%s1 + $0x50] sm:$0xf]
    %v61 = vld [vmem:[%s1 + $0x54] sm:$0xf]
    %v62 = vld [vmem:[%s1 + $0x58] sm:$0xf]
    %v63 = vld [vmem:[%s1 + $0x5c] sm:$0xf]
    %v64 = vld [vmem:[%s1 + $0x60] sm:$0xf]
    %v65 = vld [vmem:[%s1 + $0x64] sm:$0xf]
    %v66 = vld [vmem:[%s1 + $0x68] sm:$0xf]
    %v67 = vld [vmem:[%s1 + $0x6c] sm:$0xf]
    %v68 = vld [vmem:[%s1 + $0x70] sm:$0xf]
    %v69 = vld [vmem:[%s1 + $0x74] sm:$0xf]
    %v70 = vld [vmem:[%s1 + $0x78] sm:$0xf]
    %v71 = vld [vmem:[%s1 + $0x7c] sm:$0xf]
    %v73 = vunpack.c.l.b16 %v39
    %v74 = vunpack.c.h.b16 %v39
    %v75 = vpack.c.b16 %v73, %v73
    %v76 = vpack.c.b16 %v74, %v74
    %v111 = vunpack.c.l.b16 %v40
    %v112 = vunpack.c.l.b16 %v41
    %v113 = vunpack.c.l.b16 %v42
    %v114 = vunpack.c.l.b16 %v43
    %v115 = vunpack.c.l.b16 %v44
    %v116 = vunpack.c.l.b16 %v45
    %v117 = vunpack.c.l.b16 %v46
    %v118 = vunpack.c.l.b16 %v47
    %v119 = vunpack.c.l.b16 %v48
    %v120 = vunpack.c.l.b16 %v49
    %v121 = vunpack.c.l.b16 %v50
    %v122 = vunpack.c.l.b16 %v51
    %v123 = vunpack.c.l.b16 %v52
    %v124 = vunpack.c.l.b16 %v53
    %v125 = vunpack.c.l.b16 %v54
    %v126 = vunpack.c.l.b16 %v55
    %v127 = vunpack.c.l.b16 %v56
    %v128 = vunpack.c.l.b16 %v57
    %v129 = vunpack.c.l.b16 %v58
    %v130 = vunpack.c.l.b16 %v59
    %v131 = vunpack.c.l.b16 %v60
    %v132 = vunpack.c.l.b16 %v61
    %v133 = vunpack.c.l.b16 %v62
    %v134 = vunpack.c.l.b16 %v63
    %v135 = vunpack.c.l.b16 %v64
    %v136 = vunpack.c.l.b16 %v65
    %v137 = vunpack.c.l.b16 %v66
    %v138 = vunpack.c.l.b16 %v67
    %v139 = vunpack.c.l.b16 %v68
    %v140 = vunpack.c.l.b16 %v69
    %v141 = vunpack.c.l.b16 %v70
    %v142 = vunpack.c.l.b16 %v71
    %v143 = vpack.c.b16 %v112, %v111
    %v144 = vpack.c.b16 %v114, %v113
    %v145 = vpack.c.b16 %v116, %v115
    %v146 = vpack.c.b16 %v118, %v117
    %v147 = vpack.c.b16 %v120, %v119
    %v148 = vpack.c.b16 %v122, %v121
    %v149 = vpack.c.b16 %v124, %v123
    %v150 = vpack.c.b16 %v126, %v125
    %v151 = vpack.c.b16 %v128, %v127
    %v152 = vpack.c.b16 %v130, %v129
    %v153 = vpack.c.b16 %v132, %v131
    %v154 = vpack.c.b16 %v134, %v133
    %v155 = vpack.c.b16 %v136, %v135
    %v156 = vpack.c.b16 %v138, %v137
    %v157 = vpack.c.b16 %v140, %v139
    %v158 = vpack.c.b16 %v142, %v141
    %175 = vmatprep.subr.bf16.mxu0 0
    %176 = vmatpush1.bf16.msra.mxu0 %v143
    %177 = vmatprep.subr.bf16.mxu0 0
    %178 = vmatpush1.bf16.msra.mxu0 %v144
    %179 = vmatprep.subr.bf16.mxu0 0
    %180 = vmatpush1.bf16.msra.mxu0 %v145
    %181 = vmatprep.subr.bf16.mxu0 0
    %182 = vmatpush1.bf16.msra.mxu0 %v146
    %183 = vmatprep.subr.bf16.mxu0 0
    %184 = vmatpush1.bf16.msra.mxu0 %v147
    %185 = vmatprep.subr.bf16.mxu0 0
    %186 = vmatpush1.bf16.msra.mxu0 %v148
    %187 = vmatprep.subr.bf16.mxu0 0
    %188 = vmatpush1.bf16.msra.mxu0 %v149
    %189 = vmatprep.subr.bf16.mxu0 0
    %190 = vmatpush1.bf16.msra.mxu0 %v150
    %191 = vmatprep.subr.bf16.mxu0 0
    %192 = vmatpush1.bf16.msra.mxu0 %v151
    %193 = vmatprep.subr.bf16.mxu0 0
    %194 = vmatpush1.bf16.msra.mxu0 %v152
    %195 = vmatprep.subr.bf16.mxu0 0
    %196 = vmatpush1.bf16.msra.mxu0 %v153
    %197 = vmatprep.subr.bf16.mxu0 0
    %198 = vmatpush1.bf16.msra.mxu0 %v154
    %199 = vmatprep.subr.bf16.mxu0 0
    %200 = vmatpush1.bf16.msra.mxu0 %v155
    %201 = vmatprep.subr.bf16.mxu0 0
    %202 = vmatpush1.bf16.msra.mxu0 %v156
    %203 = vmatprep.subr.bf16.mxu0 0
    %204 = vmatpush1.bf16.msra.mxu0 %v157
    %205 = vmatprep.subr.bf16.mxu0 0
    %206 = vmatpush1.bf16.msra.mxu0 %v158
    %207 = vmatprep.mubr.bf16.mxu0 %v76
    %208 = vmatmul.mubr.bf16.gmra.mrb[0].mxu0 %v75
    %v209 = vpop.f32.mrb[0].mxu0
    %v210 = vadd.f32 0.0, %v209
    %v211 = vpop.f32.mrb[0].mxu0
    %v212 = vpop.f32.mrb[0].mxu0
    %v213 = vpop.f32.mrb[0].mxu0
    %214 = vdwg.mxu0
    %v215 = vadd.f32 %v38, %v210
    %vm216 = vcmask 523264
    %217 = vst.msk [vmem:[#allocation2] sm:$0xff] %vm216, %v215
    // Predicated region
    $region34: #{tpu_custom_call.1} parent=1 // pred_check
      %p218 = pneg %p32
    $region35: #{tpu_custom_call.1} parent=1 // pred_check_branch
      %220 = sbr.rel (%p218) target = $region37
    $region36: #{tpu_custom_call.1} parent=1 // pred_region
      %v221 = vld [vmem:[#allocation2] sm:$0xff]
      %v222 = vld [vmem:[%s5] sm:$0x1]
      %v223 = vlaneseq
      %v224 = vshrl.u32 %v223, 7
      %v225 = vsub.s32 0, %v224
      %v226 = vrot.slane %v222, %v225
      %v227 = vadd.f32 %v221, %v226
      %v228 = vmax.f32 %v227, 0.0
      %v229 = vld [vmem:[%s3] sm:$0xf]
      %v230 = vld [vmem:[%s3 + $0x4] sm:$0xf]
      %v231 = vld [vmem:[%s3 + $0x8] sm:$0xf]
      %v232 = vld [vmem:[%s3 + $0xc] sm:$0xf]
      %v233 = vld [vmem:[%s3 + $0x10] sm:$0xf]
      %v234 = vld [vmem:[%s3 + $0x14] sm:$0xf]
      %v235 = vld [vmem:[%s3 + $0x18] sm:$0xf]
      %v236 = vld [vmem:[%s3 + $0x1c] sm:$0xf]
      %v237 = vpack.c.bf16 %v228, %v228
      %v238 = vld [vmem:[%s5 + $0x1] sm:$0x1]
      %v239 = vlaneseq
      %v240 = vshrl.u32 %v239, 7
      %v241 = vsub.s32 0, %v240
      %v242 = vrot.slane %v238, %v241
      %v251 = vunpack.c.l.b16 %v229
      %v252 = vunpack.c.l.b16 %v230
      %v253 = vunpack.c.l.b16 %v231
      %v254 = vunpack.c.l.b16 %v232
      %v255 = vunpack.c.l.b16 %v233
      %v256 = vunpack.c.l.b16 %v234
      %v257 = vunpack.c.l.b16 %v235
      %v258 = vunpack.c.l.b16 %v236
      %v259 = vpack.c.b16 %v252, %v251
      %v260 = vpack.c.b16 %v254, %v253
      %v261 = vpack.c.b16 %v256, %v255
      %v262 = vpack.c.b16 %v258, %v257
      %v268 = vsel %vm216, %v237, 0
      %270 = vmatprep.subr.bf16.mxu0 0
      %271 = vmatpush1.bf16.msra.mxu0 %v259
      %272 = vmatprep.subr.bf16.mxu0 0
      %273 = vmatpush1.bf16.msra.mxu0 %v260
      %274 = vmatprep.subr.bf16.mxu0 0
      %275 = vmatpush1.bf16.msra.mxu0 %v261
      %276 = vmatprep.subr.bf16.mxu0 0
      %277 = vmatpush1.bf16.msra.mxu0 %v262
      %278 = vmatprep.subr.bf16.mxu0 0
      %279 = vmatpush1.bf16.msra.mxu0 0
      %280 = vmatprep.subr.bf16.mxu0 0
      %281 = vmatpush1.bf16.msra.mxu0 0
      %282 = vmatprep.subr.bf16.mxu0 0
      %283 = vmatpush1.bf16.msra.mxu0 0
      %284 = vmatprep.subr.bf16.mxu0 0
      %285 = vmatpush1.bf16.msra.mxu0 0
      %286 = vmatprep.subr.bf16.mxu0 0
      %287 = vmatpush1.bf16.msra.mxu0 0
      %288 = vmatprep.subr.bf16.mxu0 0
      %289 = vmatpush1.bf16.msra.mxu0 0
      %290 = vmatprep.subr.bf16.mxu0 0
      %291 = vmatpush1.bf16.msra.mxu0 0
      %292 = vmatprep.subr.bf16.mxu0 0
      %293 = vmatpush1.bf16.msra.mxu0 0
      %294 = vmatprep.subr.bf16.mxu0 0
      %295 = vmatpush1.bf16.msra.mxu0 0
      %296 = vmatprep.subr.bf16.mxu0 0
      %297 = vmatpush1.bf16.msra.mxu0 0
      %298 = vmatprep.subr.bf16.mxu0 0
      %299 = vmatpush1.bf16.msra.mxu0 0
      %300 = vmatprep.subr.bf16.mxu0 0
      %301 = vmatpush1.bf16.msra.mxu0 0
      %302 = vmatprep.mubr.bf16.mxu0 0
      %303 = vmatmul.mubr.bf16.gmra.mrb[0].mxu0 %v268
      %v304 = vpop.f32.mrb[0].mxu0
      %v305 = vadd.f32 %v242, %v304
      %v306 = vpop.f32.mrb[0].mxu0
      %v307 = vpop.f32.mrb[0].mxu0
      %v308 = vpop.f32.mrb[0].mxu0
      %309 = vdwg.mxu0
      %vm310 = vcmask 261120
      %v311 = vsel %vm310, %v305, 0.0
      %312 = vadd.xlane.f32.xlu0 %v311
      %v313 = vpop.xlane.xlu0 %312
      %v314 = vrcp.pop 32.0
      %v315 = vmul.f32 %v313, %v314
      %v316 = vsub.f32 %v305, %v315
      %v317 = vmul.f32 %v316, %v316
      %v318 = vsel %vm310, %v317, 0.0
      %319 = vadd.xlane.f32.xlu0 %v318
      %v320 = vpop.xlane.xlu0 %319
      %v321 = vmul.f32 %v320, %v314
      %v322 = vadd.f32 %v321, 1e-05
      %v323 = vrsqrt.pop %v322
      %v324 = vmul.f32 %v316, %v323
      %v325 = vld [vmem:[%s5 + $0x2] sm:$0x1]
      %v326 = vlaneseq
      %v327 = vshrl.u32 %v326, 7
      %v328 = vsub.s32 0, %v327
      %v329 = vrot.slane %v325, %v328
      %v330 = vmul.f32 %v324, %v329
      %v331 = vld [vmem:[%s5 + $0x3] sm:$0x1]
      %v332 = vlaneseq
      %v333 = vshrl.u32 %v332, 7
      %v334 = vsub.s32 0, %v333
      %v335 = vrot.slane %v331, %v334
      %v336 = vadd.f32 %v330, %v335
      %v337 = vld [vmem:[%s2] sm:$0xf]
      %v338 = vld [vmem:[%s4] sm:$0xf]
      %v339 = vld [vmem:[%s4 + $0x4] sm:$0xf]
      %v340 = vld [vmem:[%s4 + $0x8] sm:$0xf]
      %v341 = vld [vmem:[%s4 + $0xc] sm:$0xf]
      %v342 = vld [vmem:[%s5 + $0x4] sm:$0x1]
      %v343 = vlaneseq
      %v344 = vshrl.u32 %v343, 7
      %v345 = vsub.s32 0, %v344
      %v346 = vrot.slane %v342, %v345
      %v351 = vunpack.c.l.b16 %v338
      %v352 = vunpack.c.l.b16 %v339
      %v353 = vunpack.c.l.b16 %v340
      %v354 = vunpack.c.l.b16 %v341
      %v355 = vpack.c.b16 %v352, %v351
      %v356 = vpack.c.b16 %v354, %v353
      %v360 = vsel %vm310, %v337, 0
      %362 = vmatprep.subr.bf16.mxu0 0
      %363 = vmatpush1.bf16.msra.mxu0 %v355
      %364 = vmatprep.subr.bf16.mxu0 0
      %365 = vmatpush1.bf16.msra.mxu0 %v356
      %366 = vmatprep.subr.bf16.mxu0 0
      %367 = vmatpush1.bf16.msra.mxu0 0
      %368 = vmatprep.subr.bf16.mxu0 0
      %369 = vmatpush1.bf16.msra.mxu0 0
      %370 = vmatprep.subr.bf16.mxu0 0
      %371 = vmatpush1.bf16.msra.mxu0 0
      %372 = vmatprep.subr.bf16.mxu0 0
      %373 = vmatpush1.bf16.msra.mxu0 0
      %374 = vmatprep.subr.bf16.mxu0 0
      %375 = vmatpush1.bf16.msra.mxu0 0
      %376 = vmatprep.subr.bf16.mxu0 0
      %377 = vmatpush1.bf16.msra.mxu0 0
      %378 = vmatprep.subr.bf16.mxu0 0
      %379 = vmatpush1.bf16.msra.mxu0 0
      %380 = vmatprep.subr.bf16.mxu0 0
      %381 = vmatpush1.bf16.msra.mxu0 0
      %382 = vmatprep.subr.bf16.mxu0 0
      %383 = vmatpush1.bf16.msra.mxu0 0
      %384 = vmatprep.subr.bf16.mxu0 0
      %385 = vmatpush1.bf16.msra.mxu0 0
      %386 = vmatprep.subr.bf16.mxu0 0
      %387 = vmatpush1.bf16.msra.mxu0 0
      %388 = vmatprep.subr.bf16.mxu0 0
      %389 = vmatpush1.bf16.msra.mxu0 0
      %390 = vmatprep.subr.bf16.mxu0 0
      %391 = vmatpush1.bf16.msra.mxu0 0
      %392 = vmatprep.subr.bf16.mxu0 0
      %393 = vmatpush1.bf16.msra.mxu0 0
      %394 = vmatprep.mubr.bf16.mxu0 0
      %395 = vmatmul.mubr.bf16.gmra.mrb[0].mxu0 %v360
      %v396 = vpop.f32.mrb[0].mxu0
      %v397 = vadd.f32 %v346, %v396
      %v398 = vpop.f32.mrb[0].mxu0
      %v399 = vpop.f32.mrb[0].mxu0
      %v400 = vpop.f32.mrb[0].mxu0
      %401 = vdwg.mxu0
      %v402 = vmax.f32 %v397, 0.0
      %s403 = scalar_lea.vmem %s4, 16
      %v404 = vld [vmem:[%s403] sm:$0xf]
      %v405 = vld [vmem:[%s403 + $0x4] sm:$0xf]
      %v406 = vld [vmem:[%s403 + $0x8] sm:$0xf]
      %v407 = vld [vmem:[%s403 + $0xc] sm:$0xf]
      %v408 = vpack.c.bf16 %v402, %v402
      %v409 = vld [vmem:[%s5 + $0x5] sm:$0x1]
      %v410 = vlaneseq
      %v411 = vshrl.u32 %v410, 7
      %v412 = vsub.s32 0, %v411
      %v413 = vrot.slane %v409, %v412
      %v418 = vunpack.c.l.b16 %v404
      %v419 = vunpack.c.l.b16 %v405
      %v420 = vunpack.c.l.b16 %v406
      %v421 = vunpack.c.l.b16 %v407
      %v422 = vpack.c.b16 %v419, %v418
      %v423 = vpack.c.b16 %v421, %v420
      %v427 = vsel %vm310, %v408, 0
      %429 = vmatprep.subr.bf16.mxu0 0
      %430 = vmatpush1.bf16.msra.mxu0 %v422
      %431 = vmatprep.subr.bf16.mxu0 0
      %432 = vmatpush1.bf16.msra.mxu0 %v423
      %433 = vmatprep.subr.bf16.mxu0 0
      %434 = vmatpush1.bf16.msra.mxu0 0
      %435 = vmatprep.subr.bf16.mxu0 0
      %436 = vmatpush1.bf16.msra.mxu0 0
      %437 = vmatprep.subr.bf16.mxu0 0
      %438 = vmatpush1.bf16.msra.mxu0 0
      %439 = vmatprep.subr.bf16.mxu0 0
      %440 = vmatpush1.bf16.msra.mxu0 0
      %441 = vmatprep.subr.bf16.mxu0 0
      %442 = vmatpush1.bf16.msra.mxu0 0
      %443 = vmatprep.subr.bf16.mxu0 0
      %444 = vmatpush1.bf16.msra.mxu0 0
      %445 = vmatprep.subr.bf16.mxu0 0
      %446 = vmatpush1.bf16.msra.mxu0 0
      %447 = vmatprep.subr.bf16.mxu0 0
      %448 = vmatpush1.bf16.msra.mxu0 0
      %449 = vmatprep.subr.bf16.mxu0 0
      %450 = vmatpush1.bf16.msra.mxu0 0
      %451 = vmatprep.subr.bf16.mxu0 0
      %452 = vmatpush1.bf16.msra.mxu0 0
      %453 = vmatprep.subr.bf16.mxu0 0
      %454 = vmatpush1.bf16.msra.mxu0 0
      %455 = vmatprep.subr.bf16.mxu0 0
      %456 = vmatpush1.bf16.msra.mxu0 0
      %457 = vmatprep.subr.bf16.mxu0 0
      %458 = vmatpush1.bf16.msra.mxu0 0
      %459 = vmatprep.subr.bf16.mxu0 0
      %460 = vmatpush1.bf16.msra.mxu0 0
      %461 = vmatprep.mubr.bf16.mxu0 0
      %462 = vmatmul.mubr.bf16.gmra.mrb[0].mxu0 %v427
      %v463 = vpop.f32.mrb[0].mxu0
      %v464 = vadd.f32 %v413, %v463
      %v465 = vpop.f32.mrb[0].mxu0
      %v466 = vpop.f32.mrb[0].mxu0
      %v467 = vpop.f32.mrb[0].mxu0
      %468 = vdwg.mxu0
      %s469 = scalar_lea.vmem %s4, 32
      %v470 = vld [vmem:[%s469] sm:$0xf]
      %v471 = vld [vmem:[%s469 + $0x4] sm:$0xf]
      %v472 = vld [vmem:[%s469 + $0x8] sm:$0xf]
      %v473 = vld [vmem:[%s469 + $0xc] sm:$0xf]
      %v474 = vpack.c.bf16 %v336, %v336
      %v475 = vld [vmem:[%s5 + $0x6] sm:$0x1]
      %v476 = vlaneseq
      %v477 = vshrl.u32 %v476, 7
      %v478 = vsub.s32 0, %v477
      %v479 = vrot.slane %v475, %v478
      %v484 = vunpack.c.l.b16 %v470
      %v485 = vunpack.c.l.b16 %v471
      %v486 = vunpack.c.l.b16 %v472
      %v487 = vunpack.c.l.b16 %v473
      %v488 = vpack.c.b16 %v485, %v484
      %v489 = vpack.c.b16 %v487, %v486
      %v493 = vsel %vm310, %v474, 0
      %495 = vmatprep.subr.bf16.mxu0 0
      %496 = vmatpush1.bf16.msra.mxu0 %v488
      %497 = vmatprep.subr.bf16.mxu0 0
      %498 = vmatpush1.bf16.msra.mxu0 %v489
      %499 = vmatprep.subr.bf16.mxu0 0
      %500 = vmatpush1.bf16.msra.mxu0 0
      %501 = vmatprep.subr.bf16.mxu0 0
      %502 = vmatpush1.bf16.msra.mxu0 0
      %503 = vmatprep.subr.bf16.mxu0 0
      %504 = vmatpush1.bf16.msra.mxu0 0
      %505 = vmatprep.subr.bf16.mxu0 0
      %506 = vmatpush1.bf16.msra.mxu0 0
      %507 = vmatprep.subr.bf16.mxu0 0
      %508 = vmatpush1.bf16.msra.mxu0 0
      %509 = vmatprep.subr.bf16.mxu0 0
      %510 = vmatpush1.bf16.msra.mxu0 0
      %511 = vmatprep.subr.bf16.mxu0 0
      %512 = vmatpush1.bf16.msra.mxu0 0
      %513 = vmatprep.subr.bf16.mxu0 0
      %514 = vmatpush1.bf16.msra.mxu0 0
      %515 = vmatprep.subr.bf16.mxu0 0
      %516 = vmatpush1.bf16.msra.mxu0 0
      %517 = vmatprep.subr.bf16.mxu0 0
      %518 = vmatpush1.bf16.msra.mxu0 0
      %519 = vmatprep.subr.bf16.mxu0 0
      %520 = vmatpush1.bf16.msra.mxu0 0
      %521 = vmatprep.subr.bf16.mxu0 0
      %522 = vmatpush1.bf16.msra.mxu0 0
      %523 = vmatprep.subr.bf16.mxu0 0
      %524 = vmatpush1.bf16.msra.mxu0 0
      %525 = vmatprep.subr.bf16.mxu0 0
      %526 = vmatpush1.bf16.msra.mxu0 0
      %527 = vmatprep.mubr.bf16.mxu0 0
      %528 = vmatmul.mubr.bf16.gmra.mrb[0].mxu0 %v493
      %v529 = vpop.f32.mrb[0].mxu0
      %v530 = vadd.f32 %v479, %v529
      %v531 = vpop.f32.mrb[0].mxu0
      %v532 = vpop.f32.mrb[0].mxu0
      %v533 = vpop.f32.mrb[0].mxu0
      %534 = vdwg.mxu0
      %v535 = vmax.f32 %v530, 0.0
      %s536 = scalar_lea.vmem %s4, 48
      %v537 = vld [vmem:[%s536] sm:$0xf]
      %v538 = vld [vmem:[%s536 + $0x4] sm:$0xf]
      %v539 = vld [vmem:[%s536 + $0x8] sm:$0xf]
      %v540 = vld [vmem:[%s536 + $0xc] sm:$0xf]
      %v541 = vpack.c.bf16 %v535, %v535
      %v542 = vld [vmem:[%s5 + $0x7] sm:$0x1]
      %v543 = vlaneseq
      %v544 = vshrl.u32 %v543, 7
      %v545 = vsub.s32 0, %v544
      %v546 = vrot.slane %v542, %v545
      %v551 = vunpack.c.l.b16 %v537
      %v552 = vunpack.c.l.b16 %v538
      %v553 = vunpack.c.l.b16 %v539
      %v554 = vunpack.c.l.b16 %v540
      %v555 = vpack.c.b16 %v552, %v551
      %v556 = vpack.c.b16 %v554, %v553
      %v560 = vsel %vm310, %v541, 0
      %562 = vmatprep.subr.bf16.mxu0 0
      %563 = vmatpush1.bf16.msra.mxu0 %v555
      %564 = vmatprep.subr.bf16.mxu0 0
      %565 = vmatpush1.bf16.msra.mxu0 %v556
      %566 = vmatprep.subr.bf16.mxu0 0
      %567 = vmatpush1.bf16.msra.mxu0 0
      %568 = vmatprep.subr.bf16.mxu0 0
      %569 = vmatpush1.bf16.msra.mxu0 0
      %570 = vmatprep.subr.bf16.mxu0 0
      %571 = vmatpush1.bf16.msra.mxu0 0
      %572 = vmatprep.subr.bf16.mxu0 0
      %573 = vmatpush1.bf16.msra.mxu0 0
      %574 = vmatprep.subr.bf16.mxu0 0
      %575 = vmatpush1.bf16.msra.mxu0 0
      %576 = vmatprep.subr.bf16.mxu0 0
      %577 = vmatpush1.bf16.msra.mxu0 0
      %578 = vmatprep.subr.bf16.mxu0 0
      %579 = vmatpush1.bf16.msra.mxu0 0
      %580 = vmatprep.subr.bf16.mxu0 0
      %581 = vmatpush1.bf16.msra.mxu0 0
      %582 = vmatprep.subr.bf16.mxu0 0
      %583 = vmatpush1.bf16.msra.mxu0 0
      %584 = vmatprep.subr.bf16.mxu0 0
      %585 = vmatpush1.bf16.msra.mxu0 0
      %586 = vmatprep.subr.bf16.mxu0 0
      %587 = vmatpush1.bf16.msra.mxu0 0
      %588 = vmatprep.subr.bf16.mxu0 0
      %589 = vmatpush1.bf16.msra.mxu0 0
      %590 = vmatprep.subr.bf16.mxu0 0
      %591 = vmatpush1.bf16.msra.mxu0 0
      %592 = vmatprep.subr.bf16.mxu0 0
      %593 = vmatpush1.bf16.msra.mxu0 0
      %594 = vmatprep.mubr.bf16.mxu0 0
      %595 = vmatmul.mubr.bf16.gmra.mrb[0].mxu0 %v560
      %v596 = vpop.f32.mrb[0].mxu0
      %v597 = vadd.f32 %v546, %v596
      %v598 = vpop.f32.mrb[0].mxu0
      %v599 = vpop.f32.mrb[0].mxu0
      %v600 = vpop.f32.mrb[0].mxu0
      %601 = vdwg.mxu0
      %602 = vst.msk [vmem:[#allocation4] sm:$0xff] %vm310, %v336
      %s603 = scalar_lea.vmem [#allocation4], 8
      %604 = vst.msk [vmem:[%s603] sm:$0xff] %vm310, %v464
      %s605 = scalar_lea.vmem [#allocation4], 16
      %606 = vst.msk [vmem:[%s605] sm:$0xff] %vm310, %v597
      %s607 = sld [smem:[#allocation3]]
      %v608 = vstv %s607
      %v609 = vrcp.pop %v608
      %s610 = vtos %v609
      %v611 = vmul.f32 %v464, %v464
      %v612 = vsel %vm310, %v611, 0.0
      %613 = vadd.xlane.f32.xlu0 %v612
      %v614 = vpop.xlane.xlu0 %613
      %v615 = vmax.f32 %v614, 1e-24
      %v616 = vrsqrt.pop %v615
      %v617 = vmul.f32 %v464, %v616
      %v618 = vstv %s610
      %v619 = vmul.f32 %v617, %v618
      %v620 = vmul.f32 %v597, %v597
      %v621 = vsel %vm310, %v620, 0.0
      %622 = vadd.xlane.f32.xlu0 %v621
      %v623 = vpop.xlane.xlu0 %622
      %v624 = vmax.f32 %v623, 1e-24
      %v625 = vrsqrt.pop %v624
      %v626 = vmul.f32 %v597, %v625
      %v628 = vsel %vm310, %v619, 0
      %v631 = vsel %vm310, %v626, 0
      %633 = vmatprep.subr.mxu0 0.0
      %634 = vmatpush1.xpose.msra.mxu0 %v631
      %635 = vmatprep.subr.mxu0 0.0
      %636 = vmatpush1.xpose.msra.mxu0 0.0
      %637 = vmatprep.subr.mxu0 0.0
      %638 = vmatpush1.xpose.msra.mxu0 0.0
      %639 = vmatprep.subr.mxu0 0.0
      %640 = vmatpush1.xpose.msra.mxu0 0.0
      %641 = vmatprep.subr.mxu0 0.0
      %642 = vmatpush1.xpose.msra.mxu0 0.0
      %643 = vmatprep.subr.mxu0 0.0
      %644 = vmatpush1.xpose.msra.mxu0 0.0
      %645 = vmatprep.subr.mxu0 0.0
      %646 = vmatpush1.xpose.msra.mxu0 0.0
      %647 = vmatprep.subr.mxu0 0.0
      %648 = vmatpush1.xpose.msra.mxu0 0.0
      %649 = vmatprep.subr.mxu0 0.0
      %650 = vmatpush1.xpose.msra.mxu0 0.0
      %651 = vmatprep.subr.mxu0 0.0
      %652 = vmatpush1.xpose.msra.mxu0 0.0
      %653 = vmatprep.subr.mxu0 0.0
      %654 = vmatpush1.xpose.msra.mxu0 0.0
      %655 = vmatprep.subr.mxu0 0.0
      %656 = vmatpush1.xpose.msra.mxu0 0.0
      %657 = vmatprep.subr.mxu0 0.0
      %658 = vmatpush1.xpose.msra.mxu0 0.0
      %659 = vmatprep.subr.mxu0 0.0
      %660 = vmatpush1.xpose.msra.mxu0 0.0
      %661 = vmatprep.subr.mxu0 0.0
      %662 = vmatpush1.xpose.msra.mxu0 0.0
      %663 = vmatprep.subr.mxu0 0.0
      %664 = vmatpush1.xpose.msra.mxu0 0.0
      %665 = vmatprep.subr.mxu0 0.0
      %666 = vmatpush1.xpose.msra.mxu0 0.0
      %667 = vmatprep.subr.mxu0 0.0
      %668 = vmatpush1.xpose.msra.mxu0 0.0
      %669 = vmatprep.subr.mxu0 0.0
      %670 = vmatpush1.xpose.msra.mxu0 0.0
      %671 = vmatprep.subr.mxu0 0.0
      %672 = vmatpush1.xpose.msra.mxu0 0.0
      %673 = vmatprep.subr.mxu0 0.0
      %674 = vmatpush1.xpose.msra.mxu0 0.0
      %675 = vmatprep.subr.mxu0 0.0
      %676 = vmatpush1.xpose.msra.mxu0 0.0
      %677 = vmatprep.subr.mxu0 0.0
      %678 = vmatpush1.xpose.msra.mxu0 0.0
      %679 = vmatprep.subr.mxu0 0.0
      %680 = vmatpush1.xpose.msra.mxu0 0.0
      %681 = vmatprep.subr.mxu0 0.0
      %682 = vmatpush1.xpose.msra.mxu0 0.0
      %683 = vmatprep.subr.mxu0 0.0
      %684 = vmatpush1.xpose.msra.mxu0 0.0
      %685 = vmatprep.subr.mxu0 0.0
      %686 = vmatpush1.xpose.msra.mxu0 0.0
      %687 = vmatprep.subr.mxu0 0.0
      %688 = vmatpush1.xpose.msra.mxu0 0.0
      %689 = vmatprep.subr.mxu0 0.0
      %690 = vmatpush1.xpose.msra.mxu0 0.0
      %691 = vmatprep.subr.mxu0 0.0
      %692 = vmatpush1.xpose.msra.mxu0 0.0
      %693 = vmatprep.subr.mxu0 0.0
      %694 = vmatpush1.xpose.msra.mxu0 0.0
      %695 = vmatprep.subr.mxu0 0.0
      %696 = vmatpush1.xpose.msra.mxu0 0.0
      %697 = vmatprep.mubr.f32.mxu0 0.0
      %698 = vmatmul.mubr.f32.gmra.mrb[0].mxu0 %v628
      %v699 = vpop.f32.mrb[0].mxu0
      %v700 = vadd.f32 0.0, %v699
      %v701 = vpop.f32.mrb[0].mxu0
      %702 = vdwg.mxu0
      %v703 = vmul.f32 %v619, %v626
      %v704 = vsel %vm310, %v703, 0.0
      %705 = vadd.xlane.f32.xlu0 %v704
      %v706 = vpop.xlane.xlu0 %705
      %vm707 = vcmask 64512
      %v708 = vsel %vm707, %v700, -inf
      %709 = vmax.xlane.f32.xlu0 %v708
      %v710 = vpop.xlane.xlu0 %709
      %v711 = vsub.f32 %v700, %v710
      %v712 = vmul.f32 %v711, 1.442695
      %v713 = vpow.pop %v712
      %v714 = vsel %vm707, %v713, 0.0
      %715 = vadd.xlane.f32.xlu0 %v714
      %v716 = vpop.xlane.xlu0 %715
      %v717 = vlog2.pop %v716
      %v718 = vmul.f32 %v717, 0.6931472
      %v719 = vadd.f32 %v710, %v718
      %v720 = vrot.slane %v708, 4
      %v721 = vmax.f32 %v708, %v720
      %v722 = vrot.slane %v721, 2
      %v723 = vmax.f32 %v721, %v722
      %v724 = vrot.slane %v723, 1
      %v725 = vmax.f32 %v723, %v724
      %v726 = vsub.f32 %v700, %v725
      %v727 = vmul.f32 %v726, 1.442695
      %v728 = vpow.pop %v727
      %v729 = vsel %vm707, %v728, 0.0
      %v730 = vrot.slane %v729, 4
      %v731 = vadd.f32 %v729, %v730
      %v732 = vrot.slane %v731, 2
      %v733 = vadd.f32 %v731, %v732
      %v734 = vrot.slane %v733, 1
      %v735 = vadd.f32 %v733, %v734
      %v736 = vlog2.pop %v735
      %v737 = vmul.f32 %v736, 0.6931472
      %v738 = vadd.f32 %v725, %v737
      %vm739 = vcmask 7168
      %v740 = vsel %vm739, %v719, 0.0
      %741 = vadd.xlane.f32.xlu0 %v740
      %v742 = vpop.xlane.xlu0 %741
      %v743 = vrot.slane %v742, 4
      %v744 = vadd.f32 %v742, %v743
      %v745 = vrot.slane %v744, 2
      %v746 = vadd.f32 %v744, %v745
      %v747 = vrot.slane %v746, 1
      %v748 = vadd.f32 %v746, %v747
      %s749 = vtos %v748
      %v750 = vrcp.pop 8.0
      %s751 = vtos %v750
      %s752 = smul.f32 %s749, %s751
      %vm753 = vcmask 57344
      %v754 = vsel %vm753, %v738, 0.0
      %755 = vadd.xlane.f32.xlu0 %v754
      %v756 = vpop.xlane.xlu0 %755
      %v757 = vrot.slane %v756, 4
      %v758 = vadd.f32 %v756, %v757
      %v759 = vrot.slane %v758, 2
      %v760 = vadd.f32 %v758, %v759
      %v761 = vrot.slane %v760, 1
      %v762 = vadd.f32 %v760, %v761
      %s763 = vtos %v762
      %v764 = vrcp.pop 8.0
      %s765 = vtos %v764
      %s766 = smul.f32 %s763, %s765
      %s767 = sadd.f32 %s752, %s766
      %s768 = smul.f32 %s767, 0.5
      %v769 = vsel %vm739, %v706, 0.0
      %770 = vadd.xlane.f32.xlu0 %v769
      %v771 = vpop.xlane.xlu0 %770
      %v772 = vrot.slane %v771, 4
      %v773 = vadd.f32 %v771, %v772
      %v774 = vrot.slane %v773, 2
      %v775 = vadd.f32 %v773, %v774
      %v776 = vrot.slane %v775, 1
      %v777 = vadd.f32 %v775, %v776
      %s778 = vtos %v777
      %v779 = vrcp.pop 8.0
      %s780 = vtos %v779
      %s781 = smul.f32 %s778, %s780
      %s782 = ssub.f32 %s768, %s781
      %s783 = scalar_lea.smem [#allocation7], 0
      %784 = sst [smem:[%s783]] %s782
    $region37: #{tpu_custom_call.1} parent=1 // pred_fallthru
      _
    // Predicated region
    $region38: #{tpu_custom_call.1} parent=1 // pred_check
      _
    $region39: #{tpu_custom_call.1} parent=1 // pred_check_branch
      %786 = sbr.rel (0) target = $region41
    $region40: #{tpu_custom_call.1} parent=1 // pred_region
      %s788 = ssub.s32 384, 384
      %789 = vsyncadd [#allocation5], %s788
      %s790 = sshll.u32 [#allocation4], 4
      %s791 = int_to_ptr.vmem [resolvable:$true] %s790
      %796 = dma.vmem_to_hbm [thread:$0]  %s791, 384, %s7, [#allocation5], 128, 128, 8
    $region41: #{tpu_custom_call.1} parent=1 // pred_fallthru
      _
    // Predicated region
    $region42: #{tpu_custom_call.1} parent=1 // pred_check
      _
    $region43: #{tpu_custom_call.1} parent=1 // pred_check_branch
      %798 = sbr.rel (0) target = $region45
    $region44: #{tpu_custom_call.1} parent=1 // pred_region
      %s800 = ssub.s32 16, 16
      %801 = vsyncadd [#allocation6], %s800
      %804 = dma.smem_to_hbm [#allocation7], 16, %s8, [#allocation6]
    $region45: #{tpu_custom_call.1} parent=1 // pred_fallthru
      _
    // Predicated region
    $region46: #{tpu_custom_call.1} parent=1 // pred_check
      _
    $region47: #{tpu_custom_call.1} parent=1 // pred_check_branch
      %806 = sbr.rel (0) target = $region49
    $region48: #{tpu_custom_call.1} parent=1 // pred_region
      %807 = dma.done [#allocation5], 384
    $region49: #{tpu_custom_call.1} parent=1 // pred_fallthru
      _
    // Predicated region
    $region50: #{tpu_custom_call.1} parent=1 // pred_check
      _
    $region51: #{tpu_custom_call.1} parent=1 // pred_check_branch
      %809 = sbr.rel (0) target = $region53
    $region52: #{tpu_custom_call.1} parent=1 // pred_region
      %810 = dma.done [#allocation6], 16
    $region53: #{tpu_custom_call.1} parent=1 // pred_fallthru
      _
    %811 = sfence
    %812 = vsyncpa [#allocation5], 1
    %813 = vsyncpa [#allocation6], 1

</llo_original>
